<compile_context>
chip_gen: v5e
topology: v5e:2x2
jax: 0.10.0
libtpu: 0.0.40
codegen_flags: <defaults>
</compile_context>

<pallas_src>
import functools

import jax
import jax.numpy as jnp
from jax.experimental import pallas as pl
from jax.experimental.pallas import tpu as pltpu


def _choose_tb(B, K, *, target_bytes=8 << 20, min_steps=4):
    """Pick the batch tile size.

    Small B: one full block (block dims equal the full array dims, satisfying
    the (8, 128) rule). Larger B: a multiple of 128 chosen so that
      (a) the grid has >= `min_steps` steps (software pipeline + both v7x TCs),
      (b) each x tile is at most ~`target_bytes` (double-buffered stays well
          inside the 32 MiB scoped-VMEM limit on every generation).
    """
    if B <= 512:
        return B
    row_bytes = K * 4  # f32
    # Tile size from the per-tile byte target (multiple of 128 lanes).
    tb_bytes = max(128, (target_bytes // row_bytes) // 128 * 128)
    # Cap so the grid has at least `min_steps` steps.
    tb_steps = max(128, (B // min_steps) // 128 * 128)
    tb = min(tb_bytes, tb_steps)
    # Never larger than the rounded-up batch.
    return min(tb, ((B + 127) // 128) * 128)


def _make_kernel(apply_sigmoid):
    """Build the kernel. `apply_sigmoid` is static (sum/mean epilogue)."""

    def kernel(x_ref, w_ref, b_ref, out_ref):
        x = x_ref[...]            # (TB, K)  f32, K = C*D
        w = w_ref[...]            # (R, K)   f32, R = 1 (sum/mean) or C (concat/None)
        b = b_ref[...]            # (R, 1)   f32
        # (R, TB): contract the last dims of both operands (MXU matmul, same
        # dimension numbers as q @ k^T). Result is already transposed, so the
        # store below is lane-dense (TB on the lane axis).
        y = jax.lax.dot_general(
            w, x,
            dimension_numbers=(((1,), (1,)), ((), ())),
            preferred_element_type=jnp.float32,
        ) + b
        if apply_sigmoid:
            out_ref[...] = jax.nn.sigmoid(y) * 1000.0
        else:
            out_ref[...] = y

    return kernel


@functools.partial(jax.jit, static_argnames=("output_mode",))
def _linear_regression_pallas(x, w, b, output_mode):
    B, C, D = x.shape
    K = C * D
    # Free, contiguous reshape: (B, C, D) -> (B, C*D). Lane/sublane dense.
    x2d = x.reshape(B, K)

    if output_mode in ("sum", "mean"):
        # Fold the channel reduction into the weights/bias: the kernel does a
        # single (1, K) x (K, TB) dot — no in-kernel reduction, Cx fewer flops.
        scale = (1.0 / C) if output_mode == "mean" else 1.0
        w_eff = (w.reshape(1, K) * scale).astype(jnp.float32)   # (1, K)
        b_eff = (jnp.sum(b) * scale).reshape(1, 1)              # (1, 1)
        out_cols = 1
        apply_sigmoid = True
        transcendentals = B
    else:
        # Block-diagonal weight (C, K): row c holds w[c, :] in cols [c*D, (c+1)*D).
        # O(C^2 * D) f32; tiny at C=4/D=16.
        # TODO(synk): if C grows large, tile the C axis instead of block-diag.
        eye = jnp.eye(C, dtype=jnp.float32)
        w_eff = (eye[:, :, None] * w[None, :, :]).reshape(C, K)  # (C, K)
        b_eff = b.reshape(C, 1)                                  # (C, 1)
        out_cols = C
        apply_sigmoid = False
        transcendentals = 0

    TB = _choose_tb(B, K)
    grid = (pl.cdiv(B, TB),)
    kernel = _make_kernel(apply_sigmoid)

    cost = pl.CostEstimate(
        flops=2 * out_cols * K * B,
        transcendentals=transcendentals,
        bytes_accessed=B * K * 4 + out_cols * B * 4 + out_cols * K * 4 + out_cols * 4,
    )

    out_t = pl.pallas_call(
        kernel,
        out_shape=jax.ShapeDtypeStruct((out_cols, B), jnp.float32),
        grid=grid,
        in_specs=[
            # x tiles stream over the batch axis (auto double-buffered pipeline).
            pl.BlockSpec((TB, K), lambda i: (i, 0)),
            # Weights / bias: constant index_map -> VMEM-resident across tiles.
            pl.BlockSpec((out_cols, K), lambda i: (0, 0)),
            pl.BlockSpec((out_cols, 1), lambda i: (0, 0)),
        ],
        # Lane-dense (transposed) output slab: TB on the lane axis.
        out_specs=pl.BlockSpec((out_cols, TB), lambda i: (0, i)),
        compiler_params=pltpu.CompilerParams(
            dimension_semantics=("parallel",),
            # Explicit 32 MiB: v5e scoped default is only 16 MiB; 2 x 8 MiB
            # double-buffered x tiles + weights + output fit comfortably and
            # stay under v7x's 64 MiB physical VMEM.
            vmem_limit_bytes=32 * 1024 * 1024,
        ),
        cost_estimate=cost,
    )(x2d, w_eff, b_eff)

    # Cheap wrapper-side layout plumbing: (out_cols, B) -> (B, out_cols).
    # For sum/mean this is (1, B) -> (B, 1), effectively a free reshape.
    return out_t.T


def linear_regression_model(x, w, b, output_mode=None):
    """Mirror of LinearRegressionModel.forward.

    x: (B, C, D) float32
    w: (C, D) float32   (stacked per-channel nn.Linear weights, each (1, D))
    b: (1, C) float32   (stacked per-channel biases)
    """
    out = _linear_regression_pallas(x, w, b, output_mode)
    if output_mode in ("sum", "mean", "concat"):
        return out
    # output_mode None -> list of (B, 1) tensors, one per channel (single split op).
    return list(jnp.split(out, x.shape[1], axis=1))


def _reference(x, w, b, output_mode):
    """Plain-JAX reference matching the PyTorch semantics."""
    per_ch = jnp.einsum("bcd,cd->bc", x, w) + b            # (B, C)
    if output_mode == "sum":
        return jax.nn.sigmoid(jnp.sum(per_ch, axis=1, keepdims=True)) * 1000.0
    if output_mode == "mean":
        return jax.nn.sigmoid(jnp.mean(per_ch, axis=1, keepdims=True)) * 1000.0
    if output_mode == "concat":
        return per_ch
    return [per_ch[:, i : i + 1] for i in range(x.shape[1])]


def _check(x, w, b):
    ok = True
    for mode in ("sum", "mean", "concat", None):
        out = linear_regression_model(x, w, b, output_mode=mode)
        ref = _reference(x, w, b, mode)
        if isinstance(out, list):
            out = [jax.block_until_ready(o) for o in out]
            for o, r in zip(out, ref):
                ok &= bool(jnp.allclose(o, r, atol=1e-4, rtol=1e-4))
        else:
            out = jax.block_until_ready(out)
            ok &= bool(jnp.allclose(out, ref, atol=1e-4, rtol=1e-4))
    return ok


if __name__ == "__main__":
    C, D = 4, 16  # channel_size, input_size

    key = jax.random.PRNGKey(0)
    kx, kw, kb, kx2 = jax.random.split(key, 4)

    # nn.Linear(D, 1) default init: U(-1/sqrt(D), 1/sqrt(D)) — deterministic synthetic init
    bound = 1.0 / jnp.sqrt(jnp.float32(D))
    w = jax.random.uniform(kw, (C, D), dtype=jnp.float32, minval=-bound, maxval=bound)
    b = jax.random.uniform(kb, (1, C), dtype=jnp.float32, minval=-bound, maxval=bound)

    # Primary small-shape check (B=2, as the module implies).
    x_small = jax.random.normal(kx, (2, C, D), dtype=jnp.float32)
    ok = _check(x_small, w, b)

    # Secondary check at a ragged, tiled batch (exercises grid>1 + partial block).
    x_big = jax.random.normal(kx2, (600, C, D), dtype=jnp.float32)
    ok &= _check(x_big, w, b)

    if ok:
        print("KERNEL_OK")
    else:
        raise SystemExit("mismatch vs reference")
</pallas_src>

<mosaic_0001>
module attributes {stable_mosaic.version = 11 : i64} {
  func.func @kernel(%arg0: i32, %arg1: memref<2x64xf32, #tpu.memory_space<vmem>>, %arg2: memref<1x64xf32, #tpu.memory_space<vmem>>, %arg3: memref<1x1xf32, #tpu.memory_space<vmem>>, %arg4: memref<1x2xf32, #tpu.memory_space<vmem>>) attributes {dimension_semantics = [#tpu.dimension_semantics<parallel>], iteration_bounds = array<i64: 1>, scalar_prefetch = 0 : i64, scratch_operands = 0 : i64, tpu.core_type = #tpu.core_type<tc>, window_params = [{transform_indices = @transform_0, window_bounds = array<i64: 2, 64>}, {pipeline_mode = #tpu.pipeline_mode<synchronous>, transform_indices = @transform_1, window_bounds = array<i64: 1, 64>}, {pipeline_mode = #tpu.pipeline_mode<synchronous>, transform_indices = @transform_2, window_bounds = array<i64: 1, 1>}, {transform_indices = @transform_3, window_bounds = array<i64: 1, 2>}]} {
    %c0 = arith.constant 0 : index
    %c0_0 = arith.constant 0 : index
    %0 = vector.load %arg1[%c0, %c0_0] : memref<2x64xf32, #tpu.memory_space<vmem>>, vector<2x64xf32>
    %c0_1 = arith.constant 0 : index
    %c0_2 = arith.constant 0 : index
    %1 = vector.load %arg2[%c0_1, %c0_2] : memref<1x64xf32, #tpu.memory_space<vmem>>, vector<1x64xf32>
    %c0_3 = arith.constant 0 : index
    %c0_4 = arith.constant 0 : index
    %2 = vector.load %arg3[%c0_3, %c0_4] : memref<1x1xf32, #tpu.memory_space<vmem>>, vector<1x1xf32>
    %cst = arith.constant dense<0.000000e+00> : vector<1x2xf32>
    %3 = tpu.matmul %1, %0, %cst {dimension_numbers = #tpu.dot_dimension_numbers<[1], [1], [0], [0], [0, 0, 1, 0], [], []>} : vector<1x64xf32>, vector<2x64xf32>, vector<1x2xf32> -> vector<1x2xf32>
    %4 = vector.broadcast %2 : vector<1x1xf32> to vector<1x2xf32>
    %5 = arith.addf %3, %4 : vector<1x2xf32>
    %6 = arith.negf %5 : vector<1x2xf32>
    %7 = math.exp %6 : vector<1x2xf32>
    %cst_5 = arith.constant 1.000000e+00 : f32
    %8 = vector.broadcast %cst_5 : f32 to vector<1x2xf32>
    %9 = arith.addf %8, %7 : vector<1x2xf32>
    %10 = arith.divf %8, %9 : vector<1x2xf32>
    %cst_6 = arith.constant 1.000000e+03 : f32
    %11 = vector.broadcast %cst_6 : f32 to vector<1x2xf32>
    %12 = arith.mulf %10, %11 : vector<1x2xf32>
    %c0_7 = arith.constant 0 : index
    %c0_8 = arith.constant 0 : index
    %13 = vector.load %arg4[%c0_7, %c0_8] : memref<1x2xf32, #tpu.memory_space<vmem>>, vector<1x2xf32>
    tpu.vector_store %arg4[%c0_7, %c0_8], %12 {strides = array<i32>} : memref<1x2xf32, #tpu.memory_space<vmem>>, vector<1x2xf32>,
    return
  }
  func.func @transform_0(%arg0: i32) -> (i32, i32) {
    %c0_i32 = arith.constant 0 : i32
    %c0_i32_0 = arith.constant 0 : i32
    return %arg0, %c0_i32 : i32, i32
  }
  func.func @transform_1(%arg0: i32) -> (i32, i32) {
    %c0_i32 = arith.constant 0 : i32
    %c0_i32_0 = arith.constant 0 : i32
    %c0_i32_1 = arith.constant 0 : i32
    return %c0_i32, %c0_i32_0 : i32, i32
  }
  func.func @transform_2(%arg0: i32) -> (i32, i32) {
    %c0_i32 = arith.constant 0 : i32
    %c0_i32_0 = arith.constant 0 : i32
    %c0_i32_1 = arith.constant 0 : i32
    return %c0_i32, %c0_i32_0 : i32, i32
  }
  func.func @transform_3(%arg0: i32) -> (i32, i32) {
    %c0_i32 = arith.constant 0 : i32
    %c0_i32_0 = arith.constant 0 : i32
    return %c0_i32, %arg0 : i32, i32
  }
}

</mosaic_0001>

<llo_original>
// kernel: _linear_regression_pallas.1
$region0: #{_linear_regression_pallas.1}
  #allocation0 [shape = 'u32[]', space=smem, size = 0x4, offset = 0x4, fixed_abs, tag = 'smem constant byte address 0x4 - core index']
  #allocation1 [shape = 'u32[72,128]{1,0:T(1,128)}', space=vmem, size = 0x9000, scoped, tag = 'internal scratch']
  #allocation2 [shape = 'f32[1,1]{1,0:T(1,128)S(1)}', space=vmem, size = 0x200, scoped, tag = 'scoped memory for _linear_regression_pallas.1']
  %s0 = inlined_call_operand.vmem [shape: f32[2,64], index: 0, kind: input, shape index: {}]
  %s1 = inlined_call_operand.vmem [shape: f32[1,64], index: 1, kind: input, shape index: {}]
  %s2 = inlined_call_operand.<no memory space> [shape: f32[1,1], index: 2, kind: input, shape index: {}]
  %s3 = inlined_call_operand.hbm [shape: f32[1,2], index: 3, kind: output, shape index: {}]
  %s4 = sld [smem:[#allocation0]]
  $region22: #{_linear_regression_pallas.1} parent=0
    _
  %s6 = ssub.s32 1, %s4
  %s7 = scalar_select 0, %s6, %s4
  %v8 = vstv %s2
  %9 = vst [vmem:[#allocation2] sm:$0x1] %v8
  $region1: #{_linear_regression_pallas.1} parent=0
    #allocation3 [shape = 'u8[512]{0}', space=vmem, size = 0x400, scoped, tag = 'output window, operand 0, single buffered']
    #allocation4 [shape = 's32[1]{0}', space=sflag, size = 0x4, scoped, tag = 'scoped memory for _linear_regression_pallas.1']
    %10 = vsyncpa [#allocation4], 0
    // Predicated region
    $region2: #{_linear_regression_pallas.1} parent=1 // pred_check
      _
    $region3: #{_linear_regression_pallas.1} parent=1 // pred_check_branch
      %12 = sbr.rel (0) target = $region5
    $region4: #{_linear_regression_pallas.1} parent=1 // pred_region
      _
    $region5: #{_linear_regression_pallas.1} parent=1 // pred_fallthru
      _
    // Predicated region
    $region6: #{_linear_regression_pallas.1} parent=1 // pred_check
      _
    $region7: #{_linear_regression_pallas.1} parent=1 // pred_check_branch
      %14 = sbr.rel (0) target = $region9
    $region8: #{_linear_regression_pallas.1} parent=1 // pred_region
      _
    $region9: #{_linear_regression_pallas.1} parent=1 // pred_fallthru
      _
    // Predicated region
    $region10: #{_linear_regression_pallas.1} parent=1 // pred_check
      _
    $region11: #{_linear_regression_pallas.1} parent=1 // pred_check_branch
      %16 = sbr.rel (0) target = $region13
    $region12: #{_linear_regression_pallas.1} parent=1 // pred_region
      _
    $region13: #{_linear_regression_pallas.1} parent=1 // pred_fallthru
      _
    %v17 = vld [vmem:[%s0] sm:$0x3]
    %v18 = vld [vmem:[%s1] sm:$0x1]
    %v19 = vld [vmem:[#allocation2] sm:$0x1]
    %21 = vset.pattern.permute.xlu0 0
    %22 = vperm.xlu0 %21, %v19
    %v23 = vpop.permute.xlu0 %22
    %v25 = vperm.slane %v23, 0
    %vm26 = vcmask 523264
    %v28 = vsel %vm26, %v18, 0
    %v31 = vsel %vm26, %v17, 0
    %33 = vmatpush.xpose.msra.mxu0 0.0
    %34 = vmatpush.xpose.msra.mxu0 0.0
    %35 = vmatpush.xpose.msra.mxu0 0.0
    %36 = vmatpush.xpose.msra.mxu0 0.0
    %37 = vmatpush.xpose.msra.mxu0 0.0
    %38 = vmatpush.xpose.msra.mxu0 0.0
    %39 = vmatpush.xpose.msra.mxu0 0.0
    %40 = vmatpush.xpose.msra.mxu0 0.0
    %41 = vmatpush.xpose.msra.mxu0 0.0
    %42 = vmatpush.xpose.msra.mxu0 0.0
    %43 = vmatpush.xpose.msra.mxu0 0.0
    %44 = vmatpush.xpose.msra.mxu0 0.0
    %45 = vmatpush.xpose.msra.mxu0 0.0
    %46 = vmatpush.xpose.msra.mxu0 0.0
    %47 = vmatpush.xpose.msra.mxu0 0.0
    %48 = vmatpush.xpose.msra.mxu0 %v31
    %49 = vmatmul.f32.gmra.mxu0 %v28
    %v50 = vpop.f32.mrf.mxu0
    %v51 = vadd.f32 %v25, %v50
    %52 = vdwg.mxu0
    %v53 = vxor.u32 %v51, 2147483648
    %v54 = vmul.f32 %v53, 1.442695
    %v55 = vpow.pop %v54
    %v56 = vadd.f32 %v55, 1.0
    %v57 = vrcp.pop %v56
    %v58 = vmul.f32 %v56, %v57
    %v59 = vsub.f32 1.0, %v58
    %v60 = vmul.f32 %v57, %v59
    %v61 = vadd.f32 %v57, %v60
    %vm62 = vweird.f32 %v56
    %vm63 = vweird.f32 %v57
    %vm64 = vmor %vm62, %vm63
    %v65 = vsel %vm64, %v57, %v61
    %v66 = vand.u32 2147483647, %v56
    %vm67 = vcmp.eq.f32.partialorder %v66, 8.507059e+37
    %v68 = vand.u32 %v56, 2147483648
    %v69 = vor.u32 1.1754944e-38, %v68
    %v70 = vsel %vm67, %v69, %v65
    %v71 = vmul.f32 1.0, %v70
    %v72 = vmul.f32 %v71, 1000.0
    %vm73 = vcmask 8192
    %74 = vst.msk [vmem:[#allocation3] sm:$0x1] %vm73, %v72
    // Predicated region
    $region14: #{_linear_regression_pallas.1} parent=1 // pred_check
      _
    $region15: #{_linear_regression_pallas.1} parent=1 // pred_check_branch
      %76 = sbr.rel (0) target = $region17
    $region16: #{_linear_regression_pallas.1} parent=1 // pred_region
      %78 = vsyncadd [#allocation4], 0
      %s80 = sshll.u32 [#allocation3], 4
      %s81 = int_to_ptr.vmem [resolvable:$true] %s80
      %s82 = sshll.u32 %s3, 4
      %s83 = int_to_ptr.hbm [resolvable:$true] %s82
      %85 = dma.vmem_to_hbm [thread:$0]  %s81, 16, %s83, [#allocation4]
    $region17: #{_linear_regression_pallas.1} parent=1 // pred_fallthru
      _
    // Predicated region
    $region18: #{_linear_regression_pallas.1} parent=1 // pred_check
      _
    $region19: #{_linear_regression_pallas.1} parent=1 // pred_check_branch
      %87 = sbr.rel (0) target = $region21
    $region20: #{_linear_regression_pallas.1} parent=1 // pred_region
      %89 = dma.done [#allocation4], 16
    $region21: #{_linear_regression_pallas.1} parent=1 // pred_fallthru
      _
    %90 = vsyncpa [#allocation4], 1

</llo_original>
